<compile_context>
chip_gen: v5e
topology: v5e:2x2
jax: 0.10.0
libtpu: 0.0.40
codegen_flags: <defaults>
</compile_context>

<pallas_src>
import jax
import jax.numpy as jnp
from jax.experimental import pallas as pl
from jax.experimental.pallas import tpu as pltpu
import numpy as np

KERNEL_SIZE = 3  # PyTorch module default (constant ones kernel)


def _make_grid_layer_kernel(pad: int, h: int):
    """Build the kernel body with static K/pad/H baked in."""
    def kernel(x_ref, wbank_ref, b_ref, o_ref):
        x = x_ref[...]                          # (TB, H)
        wb = wbank_ref[...]                     # (K, H) shifted + edge-masked weights
        acc = x * wb[pad:pad + 1, :]            # center tap: x[h] * weight[h]
        for d in range(1, pad + 1):
            # x[h+d] at slot h: rotate left by d == rotate right by (H - d).
            # Lane wrap-around is killed by the zeroed edge of the weight row.
            x_plus = pltpu.roll(x, shift=h - d, axis=1)
            # x[h-d] at slot h.
            x_minus = pltpu.roll(x, shift=d, axis=1)
            acc = acc + x_plus * wb[pad + d:pad + d + 1, :]
            acc = acc + x_minus * wb[pad - d:pad - d + 1, :]
        o_ref[...] = acc + b_ref[...]
    return kernel


def _build_weight_bank(weight, kernel_size):
    """(1, H) weight -> (K, H) bank; row pad+d holds weight[h+d] (0 outside [0, H))."""
    h = weight.shape[-1]
    pad = kernel_size // 2
    w = weight.reshape(h)
    idx = jnp.arange(h)
    rows = []
    for d in range(-pad, pad + 1):
        shifted = jnp.roll(w, -d)                       # weight[h+d] at lane h (wrapped)
        valid = (idx + d >= 0) & (idx + d < h)
        rows.append(jnp.where(valid, shifted, jnp.zeros_like(shifted)))
    return jnp.stack(rows, axis=0)                      # (K, H)


def grid_layer(x, weight, bias, *, kernel_size=KERNEL_SIZE,
               tile_bytes=4 * 1024 * 1024):
    """x: (B, H); weight, bias: (1, H). Returns (B, H)."""
    # TODO(synk): even kernel_size would need torch's asymmetric 'same' padding.
    assert kernel_size % 2 == 1, "'same' conv implemented for odd kernel_size only"
    b, h = x.shape
    pad = kernel_size // 2

    # --- large, VMEM-safe batch tile (op is HBM-bandwidth bound) -------------
    itemsize = jnp.dtype(x.dtype).itemsize
    tb = max(1, tile_bytes // (h * itemsize))
    if tb >= b:
        tb = b                         # single tile: full-extent block is always legal
    else:
        tb = max(8, (tb // 8) * 8)     # sublane-aligned tile when blocking the batch

    # ragged batch: pad to a multiple of tb, slice off afterwards (no assert).
    b_pad = pl.cdiv(b, tb) * tb
    if b_pad != b:
        x = jnp.pad(x, ((0, b_pad - b), (0, 0)))

    wbank = _build_weight_bank(weight.astype(x.dtype), kernel_size)   # (K, H)
    bias2 = bias.astype(x.dtype).reshape(1, h)

    kernel = _make_grid_layer_kernel(pad, h)
    out = pl.pallas_call(
        kernel,
        out_shape=jax.ShapeDtypeStruct((b_pad, h), x.dtype),
        grid_spec=pltpu.PrefetchScalarGridSpec(
            num_scalar_prefetch=0,
            grid=(b_pad // tb,),
            in_specs=[
                pl.BlockSpec((tb, h), lambda i: (i, 0)),             # x tile (streamed)
                pl.BlockSpec((kernel_size, h), lambda i: (0, 0)),    # weight bank (resident)
                pl.BlockSpec((1, h), lambda i: (0, 0)),              # bias (resident)
            ],
            out_specs=pl.BlockSpec((tb, h), lambda i: (i, 0)),
        ),
        compiler_params=pltpu.CompilerParams(
            dimension_semantics=("parallel",)),
    )(x, wbank, bias2)

    return out[:b] if b_pad != b else out


def _xavier_uniform(key, shape):
    # torch.nn.init.xavier_uniform_ for a 2D tensor (fan_out, fan_in) = shape
    fan_out, fan_in = shape
    bound = float(np.sqrt(6.0 / (fan_in + fan_out)))
    return jax.random.uniform(key, shape, jnp.float32, minval=-bound, maxval=bound)


def _reference(x, weight, bias, kernel_size=KERNEL_SIZE):
    # plain-JAX reference of the PyTorch forward
    pad = kernel_size // 2
    xw = x * weight                                       # (B, H)
    xw_pad = jnp.pad(xw, ((0, 0), (pad, pad)))
    y = sum(xw_pad[:, d:d + x.shape[1]] for d in range(kernel_size))
    return y + bias


if __name__ == "__main__":
    grid_height = 128   # params['grid_2d']['height']
    batch = 8

    key = jax.random.PRNGKey(0)
    kx, kw, kb = jax.random.split(key, 3)

    x = jax.random.normal(kx, (batch, grid_height), jnp.float32)
    weight = _xavier_uniform(kw, (1, grid_height))
    bias = _xavier_uniform(kb, (1, grid_height))

    out = grid_layer(x, weight, bias)
    out = jax.block_until_ready(out)

    ref = _reference(x, weight, bias)
    np.testing.assert_allclose(np.asarray(out), np.asarray(ref), rtol=1e-5, atol=1e-5)

    print("KERNEL_OK")
</pallas_src>

<mosaic_0001>
module attributes {stable_mosaic.version = 11 : i64} {
  func.func @kernel(%arg0: i32, %arg1: memref<8x128xf32, #tpu.memory_space<vmem>>, %arg2: memref<3x128xf32, #tpu.memory_space<vmem>>, %arg3: memref<1x128xf32, #tpu.memory_space<vmem>>, %arg4: memref<8x128xf32, #tpu.memory_space<vmem>>) attributes {dimension_semantics = [#tpu.dimension_semantics<parallel>], iteration_bounds = array<i64: 1>, scalar_prefetch = 0 : i64, scratch_operands = 0 : i64, tpu.core_type = #tpu.core_type<tc>, window_params = [{transform_indices = @transform_0, window_bounds = array<i64: 8, 128>}, {pipeline_mode = #tpu.pipeline_mode<synchronous>, transform_indices = @transform_1, window_bounds = array<i64: 3, 128>}, {pipeline_mode = #tpu.pipeline_mode<synchronous>, transform_indices = @transform_2, window_bounds = array<i64: 1, 128>}, {transform_indices = @transform_3, window_bounds = array<i64: 8, 128>}]} {
    %c0 = arith.constant 0 : index
    %c0_0 = arith.constant 0 : index
    %0 = vector.load %arg1[%c0, %c0_0] : memref<8x128xf32, #tpu.memory_space<vmem>>, vector<8x128xf32>
    %c0_1 = arith.constant 0 : index
    %c0_2 = arith.constant 0 : index
    %1 = vector.load %arg2[%c0_1, %c0_2] : memref<3x128xf32, #tpu.memory_space<vmem>>, vector<3x128xf32>
    %2 = vector.extract_strided_slice %1 {offsets = [1, 0], sizes = [1, 128], strides = [1, 1]} : vector<3x128xf32> to vector<1x128xf32>
    %3 = vector.broadcast %2 : vector<1x128xf32> to vector<8x128xf32>
    %4 = arith.mulf %0, %3 : vector<8x128xf32>
    %c127_i32 = arith.constant 127 : i32
    %5 = tpu.dynamic_rotate %0 by %c127_i32 dim 1 : vector<8x128xf32>, i32 -> vector<8x128xf32>
    %c1_i32 = arith.constant 1 : i32
    %6 = tpu.dynamic_rotate %0 by %c1_i32 dim 1 : vector<8x128xf32>, i32 -> vector<8x128xf32>
    %7 = vector.extract_strided_slice %1 {offsets = [2, 0], sizes = [1, 128], strides = [1, 1]} : vector<3x128xf32> to vector<1x128xf32>
    %8 = vector.broadcast %7 : vector<1x128xf32> to vector<8x128xf32>
    %9 = arith.mulf %5, %8 : vector<8x128xf32>
    %10 = arith.addf %4, %9 : vector<8x128xf32>
    %11 = vector.extract_strided_slice %1 {offsets = [0, 0], sizes = [1, 128], strides = [1, 1]} : vector<3x128xf32> to vector<1x128xf32>
    %12 = vector.broadcast %11 : vector<1x128xf32> to vector<8x128xf32>
    %13 = arith.mulf %6, %12 : vector<8x128xf32>
    %14 = arith.addf %10, %13 : vector<8x128xf32>
    %c0_3 = arith.constant 0 : index
    %c0_4 = arith.constant 0 : index
    %15 = vector.load %arg3[%c0_3, %c0_4] : memref<1x128xf32, #tpu.memory_space<vmem>>, vector<1x128xf32>
    %16 = vector.broadcast %15 : vector<1x128xf32> to vector<8x128xf32>
    %17 = arith.addf %14, %16 : vector<8x128xf32>
    %c0_5 = arith.constant 0 : index
    %c0_6 = arith.constant 0 : index
    %18 = vector.load %arg4[%c0_5, %c0_6] : memref<8x128xf32, #tpu.memory_space<vmem>>, vector<8x128xf32>
    tpu.vector_store %arg4[%c0_5, %c0_6], %17 {strides = array<i32>} : memref<8x128xf32, #tpu.memory_space<vmem>>, vector<8x128xf32>,
    return
  }
  func.func @transform_0(%arg0: i32) -> (i32, i32) {
    %c0_i32 = arith.constant 0 : i32
    %c0_i32_0 = arith.constant 0 : i32
    return %arg0, %c0_i32 : i32, i32
  }
  func.func @transform_1(%arg0: i32) -> (i32, i32) {
    %c0_i32 = arith.constant 0 : i32
    %c0_i32_0 = arith.constant 0 : i32
    %c0_i32_1 = arith.constant 0 : i32
    return %c0_i32, %c0_i32_0 : i32, i32
  }
  func.func @transform_2(%arg0: i32) -> (i32, i32) {
    %c0_i32 = arith.constant 0 : i32
    %c0_i32_0 = arith.constant 0 : i32
    %c0_i32_1 = arith.constant 0 : i32
    return %c0_i32, %c0_i32_0 : i32, i32
  }
  func.func @transform_3(%arg0: i32) -> (i32, i32) {
    %c0_i32 = arith.constant 0 : i32
    %c0_i32_0 = arith.constant 0 : i32
    return %arg0, %c0_i32 : i32, i32
  }
}

</mosaic_0001>

<llo_original>
// kernel: tpu_custom_call.1
$region0: #{tpu_custom_call.1}
  #allocation0 [shape = 'u32[]', space=smem, size = 0x4, offset = 0x4, fixed_abs, tag = 'smem constant byte address 0x4 - core index']
  #allocation1 [shape = 'u32[72,128]{1,0:T(1,128)}', space=vmem, size = 0x9000, scoped, tag = 'internal scratch']
  %s0 = inlined_call_operand.hbm [shape: f32[8,128], index: 0, kind: input, shape index: {}]
  %s1 = inlined_call_operand.hbm [shape: f32[3,128], index: 1, kind: input, shape index: {}]
  %s2 = inlined_call_operand.vmem [shape: f32[1,128], index: 2, kind: input, shape index: {}]
  %s3 = inlined_call_operand.hbm [shape: f32[8,128], index: 3, kind: output, shape index: {}]
  %s4 = sld [smem:[#allocation0]]
  $region30: #{tpu_custom_call.1} parent=0
    _
  %s6 = ssub.s32 1, %s4
  %s7 = scalar_select 0, %s6, %s4
  $region1: #{tpu_custom_call.1} parent=0
    #allocation2 [shape = 'u8[4096]{0}', space=vmem, size = 0x1000, scoped, tag = 'input window, operand 0, single buffered']
    #allocation3 [shape = 's32[1]{0}', space=sflag, size = 0x4, scoped, tag = 'scoped memory for tpu_custom_call.1']
    #allocation4 [shape = 's32[1]{0}', space=sflag, size = 0x4, scoped, tag = 'scoped memory for tpu_custom_call.1']
    #allocation5 [shape = 'u8[2048]{0}', space=vmem, size = 0x800, scoped, tag = 'input window, operand 1, single buffered']
    #allocation6 [shape = 's32[1]{0}', space=sflag, size = 0x4, scoped, tag = 'scoped memory for tpu_custom_call.1']
    #allocation7 [shape = 'u8[4096]{0}', space=vmem, size = 0x1000, scoped, tag = 'output window, operand 0, single buffered']
    %8 = vsyncpa [#allocation3], 0
    %9 = vsyncpa [#allocation6], 0
    %10 = vsyncpa [#allocation4], 0
    // Predicated region
    $region2: #{tpu_custom_call.1} parent=1 // pred_check
      _
    $region3: #{tpu_custom_call.1} parent=1 // pred_check_branch
      %12 = sbr.rel (0) target = $region5
    $region4: #{tpu_custom_call.1} parent=1 // pred_region
      %14 = vsyncadd [#allocation3], 0
      %s16 = sshll.u32 %s0, 4
      %s17 = int_to_ptr.hbm [resolvable:$true] %s16
      %s18 = sshll.u32 [#allocation2], 4
      %s19 = int_to_ptr.vmem [resolvable:$true] %s18
      %21 = dma.hbm_to_vmem [thread:$0]  %s17, 128, %s19, [#allocation3]
    $region5: #{tpu_custom_call.1} parent=1 // pred_fallthru
      _
    // Predicated region
    $region6: #{tpu_custom_call.1} parent=1 // pred_check
      _
    $region7: #{tpu_custom_call.1} parent=1 // pred_check_branch
      %23 = sbr.rel (0) target = $region9
    $region8: #{tpu_custom_call.1} parent=1 // pred_region
      %25 = vsyncadd [#allocation6], 0
      %s27 = sshll.u32 %s1, 4
      %s28 = int_to_ptr.hbm [resolvable:$true] %s27
      %s29 = sshll.u32 [#allocation5], 4
      %s30 = int_to_ptr.vmem [resolvable:$true] %s29
      %32 = dma.hbm_to_vmem [thread:$0]  %s28, 64, %s30, [#allocation6]
    $region9: #{tpu_custom_call.1} parent=1 // pred_fallthru
      _
    // Predicated region
    $region10: #{tpu_custom_call.1} parent=1 // pred_check
      _
    $region11: #{tpu_custom_call.1} parent=1 // pred_check_branch
      %34 = sbr.rel (0) target = $region13
    $region12: #{tpu_custom_call.1} parent=1 // pred_region
      _
    $region13: #{tpu_custom_call.1} parent=1 // pred_fallthru
      _
    // Predicated region
    $region14: #{tpu_custom_call.1} parent=1 // pred_check
      _
    $region15: #{tpu_custom_call.1} parent=1 // pred_check_branch
      %36 = sbr.rel (0) target = $region17
    $region16: #{tpu_custom_call.1} parent=1 // pred_region
      %38 = dma.done [#allocation3], 128
    $region17: #{tpu_custom_call.1} parent=1 // pred_fallthru
      _
    // Predicated region
    $region18: #{tpu_custom_call.1} parent=1 // pred_check
      _
    $region19: #{tpu_custom_call.1} parent=1 // pred_check_branch
      %40 = sbr.rel (0) target = $region21
    $region20: #{tpu_custom_call.1} parent=1 // pred_region
      %42 = dma.done [#allocation6], 64
    $region21: #{tpu_custom_call.1} parent=1 // pred_fallthru
      _
    %v43 = vld [vmem:[#allocation2] sm:$0xff]
    %v44 = vld [vmem:[#allocation5] sm:$0x7]
    %v45 = vperm.slane %v44, 1
    %v46 = vmul.f32 %v43, %v45
    %47 = vrot.lane.b32.xlu0 %v43, 127
    %v48 = vpop.permute.xlu0 %47
    %49 = vrot.lane.b32.xlu0 %v43, 1
    %v50 = vpop.permute.xlu0 %49
    %v51 = vperm.slane %v44, 2
    %v52 = vmul.f32 %v48, %v51
    %v53 = vadd.f32 %v46, %v52
    %v54 = vperm.slane %v44, 0
    %v55 = vmul.f32 %v50, %v54
    %v56 = vadd.f32 %v53, %v55
    %v57 = vld [vmem:[%s2] sm:$0x1]
    %v59 = vperm.slane %v57, 0
    %v61 = vadd.f32 %v56, %v59
    %62 = vst [vmem:[#allocation7] sm:$0xff] %v61
    // Predicated region
    $region22: #{tpu_custom_call.1} parent=1 // pred_check
      _
    $region23: #{tpu_custom_call.1} parent=1 // pred_check_branch
      %64 = sbr.rel (0) target = $region25
    $region24: #{tpu_custom_call.1} parent=1 // pred_region
      %66 = vsyncadd [#allocation4], 0
      %s68 = sshll.u32 [#allocation7], 4
      %s69 = int_to_ptr.vmem [resolvable:$true] %s68
      %s70 = sshll.u32 %s3, 4
      %s71 = int_to_ptr.hbm [resolvable:$true] %s70
      %73 = dma.vmem_to_hbm [thread:$0]  %s69, 128, %s71, [#allocation4]
    $region25: #{tpu_custom_call.1} parent=1 // pred_fallthru
      _
    // Predicated region
    $region26: #{tpu_custom_call.1} parent=1 // pred_check
      _
    $region27: #{tpu_custom_call.1} parent=1 // pred_check_branch
      %75 = sbr.rel (0) target = $region29
    $region28: #{tpu_custom_call.1} parent=1 // pred_region
      %77 = dma.done [#allocation4], 128
    $region29: #{tpu_custom_call.1} parent=1 // pred_fallthru
      _
    %78 = vsyncpa [#allocation3], 1
    %79 = vsyncpa [#allocation6], 1
    %80 = vsyncpa [#allocation4], 1

</llo_original>
